<compile_context>
chip_gen: v7x
topology: tpu7x:2x2x1
jax: 0.10.0
libtpu: 0.0.40
codegen_flags: <defaults>
</compile_context>

<pallas_src>
import functools

import jax
import jax.numpy as jnp
from jax.experimental import pallas as pl
from jax.experimental.pallas import tpu as pltpu
import numpy as np


_INT8_SUBLANE = 32  # int8 packs 4 rows/sublane -> native (32, 128) tile


def _mask_kernel(action_dim, action_visible, t_ref, d_ref, obs_ref, out_ref):
    """Builds mask for a (TB, T*D) lane-dense output block.

    t_ref   : VMEM (1, T*D) int32 — time index of each flat (t, d) position
    d_ref   : VMEM (1, T*D) int32 — feature index of each flat (t, d) position
    obs_ref : VMEM (TB, 1)  int32 — per-batch-row obs_steps
    out_ref : VMEM (TB, T*D) int8 — 0/1 mask
    """
    t_idx = t_ref[...]          # (1, N)
    d_idx = d_ref[...]          # (1, N)
    obs_step = obs_ref[...]     # (TB, 1)

    is_obs_dim = d_idx >= action_dim
    mask = (t_idx < obs_step) & is_obs_dim              # (TB, N) via broadcast
    if action_visible:
        action_step = jnp.maximum(obs_step - 1, 0)
        is_action_dim = d_idx < action_dim
        mask = mask | ((t_idx < action_step) & is_action_dim)

    out_ref[...] = mask.astype(out_ref.dtype)


def _make_obs_steps(B, max_n_obs_steps, fix_obs_steps, seed):
    if fix_obs_steps:
        return jnp.full((B,), max_n_obs_steps, dtype=jnp.int32)
    # TODO(synk): torch.Generator bit-parity not reproducible; distribution
    # (randint in [1, max_n_obs_steps]) matches.
    key = jax.random.PRNGKey(0 if seed is None else seed)
    return jax.random.randint(key, (B,), minval=1, maxval=max_n_obs_steps + 1,
                              dtype=jnp.int32)


def _choose_block_b(b_eff, row_bytes):
    """Rows per grid step: ~2 MiB int8 output blocks (x2 double-buffered),
    rounded to the int8 sublane packing, capped at the full batch."""
    target = max(1, (2 << 20) // max(row_bytes, 1))
    if target >= b_eff:
        return b_eff                       # single block, full extent
    return max(_INT8_SUBLANE, (target // _INT8_SUBLANE) * _INT8_SUBLANE)


def lowdim_mask_generator(shape,
                          action_dim,
                          obs_dim,
                          max_n_obs_steps=2,
                          fix_obs_steps=True,
                          action_visible=False,
                          seed=None,
                          block_b=None):
    """JAX/Pallas equivalent of LowdimMaskGenerator.forward(shape, seed)."""
    B, T, D = shape
    assert D == action_dim + obs_dim
    N = T * D

    obs_steps = _make_obs_steps(B, max_n_obs_steps, fix_obs_steps, seed)

    # fix_obs_steps: every batch row is identical -> compute 1 row, broadcast.
    obs_eff = obs_steps[:1] if fix_obs_steps else obs_steps
    B_eff = int(obs_eff.shape[0])

    # Tiny index metadata (N int32 each) built once in plain JAX; avoids
    # in-kernel integer div/mod.
    flat = jnp.arange(N, dtype=jnp.int32)
    t_flat = (flat // D).reshape(1, N)
    d_flat = (flat % D).reshape(1, N)
    obs_2d = obs_eff.astype(jnp.int32).reshape(B_eff, 1)

    if block_b is None:
        tb = _choose_block_b(B_eff, N)
    else:
        tb = min(block_b, B_eff)
        assert tb == B_eff or tb % _INT8_SUBLANE == 0, (
            "block_b must be a multiple of 32 or cover the full batch")
    grid = (pl.cdiv(B_eff, tb),)

    kernel = functools.partial(_mask_kernel, action_dim, action_visible)

    out_i8 = pl.pallas_call(
        kernel,
        out_shape=jax.ShapeDtypeStruct((B_eff, N), jnp.int8),
        grid_spec=pltpu.PrefetchScalarGridSpec(
            num_scalar_prefetch=0,
            grid=grid,
            in_specs=[
                pl.BlockSpec((1, N), lambda i: (0, 0)),   # t_flat (constant)
                pl.BlockSpec((1, N), lambda i: (0, 0)),   # d_flat (constant)
                pl.BlockSpec((tb, 1), lambda i: (i, 0)),  # obs_steps rows
            ],
            out_specs=pl.BlockSpec((tb, N), lambda i: (i, 0)),
        ),
        compiler_params=pltpu.CompilerParams(
            dimension_semantics=("parallel",)),
    )(t_flat, d_flat, obs_2d)

    # TODO(synk): emit jnp.bool_ straight from the kernel once Mosaic bool
    # stores are reliably supported; this 1-byte cast + reshape is the only
    # remaining wrapper pass and fuses with downstream consumers.
    mask = out_i8.reshape(B_eff, T, D).astype(jnp.bool_)
    if B_eff != B:
        mask = jnp.broadcast_to(mask, (B, T, D))
    return mask


def _reference_mask(shape, action_dim, obs_dim, obs_steps, action_visible):
    """Pure-numpy reference mirroring the PyTorch module."""
    B, T, D = shape
    obs_steps = np.asarray(obs_steps).astype(np.int64)
    is_action_dim = np.zeros(shape, dtype=bool)
    is_action_dim[..., :action_dim] = True
    is_obs_dim = ~is_action_dim
    steps = np.arange(T).reshape(1, T)
    obs_mask = (steps < obs_steps[:, None])[:, :, None] & is_obs_dim
    mask = obs_mask
    if action_visible:
        action_steps = np.maximum(obs_steps - 1, 0)
        action_mask = (steps < action_steps[:, None])[:, :, None] & is_action_dim
        mask = mask | action_mask
    return mask


if __name__ == "__main__":
    # Module-consistent shapes: D = action_dim + obs_dim.
    action_dim, obs_dim = 2, 3
    D = action_dim + obs_dim
    T = 8
    max_n_obs_steps = 2

    # The module's only parameter is an empty dummy nn.Parameter() -> no-op.
    # TODO(synk): nn.Parameter() is empty/unused; nothing to initialize.

    # Case 1: default config (fix_obs_steps=True, action_visible=False).
    # Exercises the single-row kernel + wrapper broadcast fast path.
    B1 = 2
    mask1 = lowdim_mask_generator((B1, T, D), action_dim, obs_dim,
                                  max_n_obs_steps, fix_obs_steps=True,
                                  action_visible=False)
    jax.block_until_ready(mask1)
    ref1 = _reference_mask((B1, T, D), action_dim, obs_dim,
                           np.full((B1,), max_n_obs_steps), False)
    assert mask1.dtype == jnp.bool_ and mask1.shape == (B1, T, D)
    assert np.array_equal(np.asarray(mask1), ref1)

    # Case 2: action_visible=True (exercises the OR path in-kernel).
    mask2 = lowdim_mask_generator((B1, T, D), action_dim, obs_dim,
                                  max_n_obs_steps, fix_obs_steps=True,
                                  action_visible=True)
    jax.block_until_ready(mask2)
    ref2 = _reference_mask((B1, T, D), action_dim, obs_dim,
                           np.full((B1,), max_n_obs_steps), True)
    assert np.array_equal(np.asarray(mask2), ref2)

    # Case 3: fix_obs_steps=False with a larger batch and a forced block size
    # to exercise the multi-step grid and the per-row obs_steps broadcast.
    B3, seed = 64, 0
    mask3 = lowdim_mask_generator((B3, T, D), action_dim, obs_dim,
                                  max_n_obs_steps, fix_obs_steps=False,
                                  action_visible=True, seed=seed, block_b=32)
    jax.block_until_ready(mask3)
    obs3 = np.asarray(_make_obs_steps(B3, max_n_obs_steps, False, seed))
    ref3 = _reference_mask((B3, T, D), action_dim, obs_dim, obs3, True)
    assert np.array_equal(np.asarray(mask3), ref3)

    print("KERNEL_OK")
</pallas_src>

<mosaic_0001>
module attributes {stable_mosaic.version = 11 : i64} {
  func.func @_mask_kernel(%arg0: i32, %arg1: memref<1x40xi32, #tpu.memory_space<vmem>>, %arg2: memref<1x40xi32, #tpu.memory_space<vmem>>, %arg3: memref<1x1xi32, #tpu.memory_space<vmem>>, %arg4: memref<1x40xi8, #tpu.memory_space<vmem>>) attributes {dimension_semantics = [#tpu.dimension_semantics<parallel>], iteration_bounds = array<i64: 1>, scalar_prefetch = 0 : i64, scratch_operands = 0 : i64, tpu.core_type = #tpu.core_type<tc>, window_params = [{pipeline_mode = #tpu.pipeline_mode<synchronous>, transform_indices = @transform_0, window_bounds = array<i64: 1, 40>}, {pipeline_mode = #tpu.pipeline_mode<synchronous>, transform_indices = @transform_1, window_bounds = array<i64: 1, 40>}, {transform_indices = @transform_2, window_bounds = array<i64: 1, 1>}, {transform_indices = @transform_3, window_bounds = array<i64: 1, 40>}]} {
    %c0 = arith.constant 0 : index
    %c0_0 = arith.constant 0 : index
    %0 = vector.load %arg1[%c0, %c0_0] : memref<1x40xi32, #tpu.memory_space<vmem>>, vector<1x40xi32>
    %c0_1 = arith.constant 0 : index
    %c0_2 = arith.constant 0 : index
    %1 = vector.load %arg2[%c0_1, %c0_2] : memref<1x40xi32, #tpu.memory_space<vmem>>, vector<1x40xi32>
    %c0_3 = arith.constant 0 : index
    %c0_4 = arith.constant 0 : index
    %2 = vector.load %arg3[%c0_3, %c0_4] : memref<1x1xi32, #tpu.memory_space<vmem>>, vector<1x1xi32>
    %c2_i32 = arith.constant 2 : i32
    %3 = vector.broadcast %c2_i32 : i32 to vector<1x40xi32>
    %4 = arith.cmpi sge, %1, %3 : vector<1x40xi32>
    %5 = vector.broadcast %2 : vector<1x1xi32> to vector<1x40xi32>
    %6 = arith.cmpi slt, %0, %5 : vector<1x40xi32>
    %7 = arith.andi %6, %4 : vector<1x40xi1>
    %8 = arith.extui %7 : vector<1x40xi1> to vector<1x40xi8>
    %c0_5 = arith.constant 0 : index
    %c0_6 = arith.constant 0 : index
    %9 = vector.load %arg4[%c0_5, %c0_6] : memref<1x40xi8, #tpu.memory_space<vmem>>, vector<1x40xi8>
    tpu.vector_store %arg4[%c0_5, %c0_6], %8 {strides = array<i32>} : memref<1x40xi8, #tpu.memory_space<vmem>>, vector<1x40xi8>,
    return
  }
  func.func @transform_0(%arg0: i32) -> (i32, i32) {
    %c0_i32 = arith.constant 0 : i32
    %c0_i32_0 = arith.constant 0 : i32
    %c0_i32_1 = arith.constant 0 : i32
    return %c0_i32, %c0_i32_0 : i32, i32
  }
  func.func @transform_1(%arg0: i32) -> (i32, i32) {
    %c0_i32 = arith.constant 0 : i32
    %c0_i32_0 = arith.constant 0 : i32
    %c0_i32_1 = arith.constant 0 : i32
    return %c0_i32, %c0_i32_0 : i32, i32
  }
  func.func @transform_2(%arg0: i32) -> (i32, i32) {
    %c0_i32 = arith.constant 0 : i32
    %c0_i32_0 = arith.constant 0 : i32
    return %arg0, %c0_i32 : i32, i32
  }
  func.func @transform_3(%arg0: i32) -> (i32, i32) {
    %c0_i32 = arith.constant 0 : i32
    %c0_i32_0 = arith.constant 0 : i32
    return %arg0, %c0_i32 : i32, i32
  }
}

</mosaic_0001>

<llo_original>
// kernel: tpu_custom_call.1
$region0: #{tpu_custom_call.1}
  #allocation0 [shape = 'u32[]', space=smem, size = 0x4, offset = 0x4, fixed_abs, tag = 'smem constant byte address 0x4 - core index']
  #allocation1 [shape = 'u32[144,128]{1,0:T(1,128)}', space=vmem, size = 0x12000, scoped, tag = 'internal scratch']
  #allocation2 [shape = 's32[1,1]{1,0:T(1,128)S(1)}', space=vmem, size = 0x200, scoped, tag = 'scoped memory for tpu_custom_call.1']
  %s0 = inlined_call_operand.vmem [shape: s32[1,40], index: 0, kind: input, shape index: {}]
  %s1 = inlined_call_operand.vmem [shape: s32[1,40], index: 1, kind: input, shape index: {}]
  %s2 = inlined_call_operand.<no memory space> [shape: s32[1,1], index: 2, kind: input, shape index: {}]
  %s3 = inlined_call_operand.hbm [shape: s8[1,40], index: 3, kind: output, shape index: {}]
  %s4 = sld [smem:[#allocation0]]
  $region22: #{tpu_custom_call.1} parent=0
    _
  %s6 = ssub.s32 1, %s4
  %s7 = scalar_select 0, %s6, %s4
  %v8 = vstv %s2
  %9 = vst [vmem:[#allocation2] sm:$0x1] %v8
  $region1: #{tpu_custom_call.1} parent=0
    #allocation3 [shape = 'u8[512]{0}', space=vmem, size = 0x400, scoped, tag = 'output window, operand 0, single buffered']
    #allocation4 [shape = 's32[1]{0}', space=sflag, size = 0x4, scoped, tag = 'scoped memory for tpu_custom_call.1']
    %10 = vsyncpa [#allocation4], 0
    // Predicated region
    $region2: #{tpu_custom_call.1} parent=1 // pred_check
      _
    $region3: #{tpu_custom_call.1} parent=1 // pred_check_branch
      %12 = sbr.rel (0) target = $region5
    $region4: #{tpu_custom_call.1} parent=1 // pred_region
      _
    $region5: #{tpu_custom_call.1} parent=1 // pred_fallthru
      _
    // Predicated region
    $region6: #{tpu_custom_call.1} parent=1 // pred_check
      _
    $region7: #{tpu_custom_call.1} parent=1 // pred_check_branch
      %14 = sbr.rel (0) target = $region9
    $region8: #{tpu_custom_call.1} parent=1 // pred_region
      _
    $region9: #{tpu_custom_call.1} parent=1 // pred_fallthru
      _
    // Predicated region
    $region10: #{tpu_custom_call.1} parent=1 // pred_check
      _
    $region11: #{tpu_custom_call.1} parent=1 // pred_check_branch
      %16 = sbr.rel (0) target = $region13
    $region12: #{tpu_custom_call.1} parent=1 // pred_region
      _
    $region13: #{tpu_custom_call.1} parent=1 // pred_fallthru
      _
    %v19 = vld [vmem:[%s0] sm:$0x1]
    %v20 = vld [vmem:[%s1] sm:$0x1]
    %v21 = vld [vmem:[#allocation2] sm:$0x1]
    %vm22 = vcmp.ge.s32.totalorder %v20, 2
    %23 = vset.pattern.permute.xlu0 0
    %24 = vperm.xlu0 %23, %v21
    %v25 = vpop.permute.xlu0 %24
    %v26 = vlaneseq
    %v27 = vshrl.u32 %v26, 7
    %v28 = vsub.s32 0, %v27
    %v29 = vrot.slane %v25, %v28
    %vm30 = vcmp.lt.s32.totalorder %v19, %v29
    %vm31 = vmand %vm30, %vm22
    %v32 = vsel %vm31, 1, 0
    %v33 = vpack.c.b16 %v32, %v32
    %v34 = vpack.c.b8 %v33, %v33
    %vm35 = vnez %v34
    %v36 = vsel %vm35, 16843009, 0
    %vm37 = vcmask 319488
    %vm38 = vsmask.f32 0
    %vm39 = vmand %vm37, %vm38
    %v40 = vld [vmem:[#allocation3] sm:$0x1]
    %v41 = vsel %vm39, %v36, %v40
    %42 = vst [vmem:[#allocation3] sm:$0x1] %v41
    // Predicated region
    $region14: #{tpu_custom_call.1} parent=1 // pred_check
      _
    $region15: #{tpu_custom_call.1} parent=1 // pred_check_branch
      %44 = sbr.rel (0) target = $region17
    $region16: #{tpu_custom_call.1} parent=1 // pred_region
      %s46 = ssub.s32 16, 16
      %47 = vsyncadd [#allocation4], %s46
      %s49 = sshll.u32 [#allocation3], 4
      %s50 = int_to_ptr.vmem [resolvable:$true] %s49
      %52 = dma.vmem_to_hbm [thread:$0]  %s50, 16, %s3, [#allocation4]
    $region17: #{tpu_custom_call.1} parent=1 // pred_fallthru
      _
    // Predicated region
    $region18: #{tpu_custom_call.1} parent=1 // pred_check
      _
    $region19: #{tpu_custom_call.1} parent=1 // pred_check_branch
      %54 = sbr.rel (0) target = $region21
    $region20: #{tpu_custom_call.1} parent=1 // pred_region
      %55 = dma.done [#allocation4], 16
    $region21: #{tpu_custom_call.1} parent=1 // pred_fallthru
      _
    %56 = vsyncpa [#allocation4], 1

</llo_original>
